<compile_context>
chip_gen: v5e
topology: v5e:2x2
jax: 0.10.0
libtpu: 0.0.40
codegen_flags: <defaults>
</compile_context>

<pallas_src>
import functools

import jax
import jax.numpy as jnp
from jax.experimental import pallas as pl
from jax.experimental.pallas import tpu as pltpu

MAX_ROW_TILE = 1024                    # rows per block (multiple of 8)
VMEM_INPUT_BUDGET = 16 * 1024 * 1024   # 2 inputs x 2 buffers + f32 accumulator


def _continuity_loss_kernel(a_ref, b_ref, o_ref, acc_ref, *,
                            n_internal, row_tile, inv_count):
    b = pl.program_id(0)
    t = pl.program_id(1)

    @pl.when(jnp.logical_and(b == 0, t == 0))
    def _():
        acc_ref[...] = jnp.zeros_like(acc_ref)

    # r: (1, row_tile, D) in f32 (cast covers bf16 inputs; no-op for f32).
    r = a_ref[...].astype(jnp.float32) + b_ref[...].astype(jnp.float32)

    # Mask rows >= n_internal (ragged last tile and any partial-block padding).
    row_idx = t * row_tile + jax.lax.broadcasted_iota(jnp.int32, r.shape, 1)
    r = jnp.where(row_idx < n_internal, r, 0.0)

    # Elementwise VPU accumulation; no per-step cross-lane reduce.
    acc_ref[...] += r * r

    @pl.when(jnp.logical_and(b == pl.num_programs(0) - 1,
                             t == pl.num_programs(1) - 1))
    def _():
        o_ref[0, 0] = jnp.sum(acc_ref[...]) * inv_count


def continuity_loss(d_ux_x, d_uy_y, n_internal):
    """Pallas equivalent of ContinuityLoss(n_internal)(d_ux_x, d_uy_y)."""
    assert d_ux_x.shape == d_uy_y.shape
    B, N, D = d_ux_x.shape
    assert 0 < n_internal <= N

    # Row-tile sizing: as large as possible while keeping
    # 2 inputs x 2 pipeline buffers x tile + f32 accumulator under budget.
    in_bytes = jnp.dtype(d_ux_x.dtype).itemsize
    bytes_per_row = D * (4 * in_bytes + 4)
    max_rows_vmem = max(8, (VMEM_INPUT_BUDGET // bytes_per_row) // 8 * 8)
    row_tile = min(MAX_ROW_TILE, N, max_rows_vmem)
    # row_tile is either a multiple of 8 (1024 / vmem cap) or equals the full
    # node extent N, so the (8, 128) block constraint is always satisfied
    # (D is kept full-extent on the lane axis).
    num_tiles = pl.cdiv(n_internal, row_tile)

    count = B * n_internal * D
    kernel = functools.partial(
        _continuity_loss_kernel,
        n_internal=n_internal,
        row_tile=row_tile,
        inv_count=float(1.0 / count),
    )

    out = pl.pallas_call(
        kernel,
        out_shape=jax.ShapeDtypeStruct((1, 1), jnp.float32),
        grid_spec=pltpu.PrefetchScalarGridSpec(
            num_scalar_prefetch=0,
            grid=(B, num_tiles),
            in_specs=[
                pl.BlockSpec((1, row_tile, D), lambda b, t: (b, t, 0)),
                pl.BlockSpec((1, row_tile, D), lambda b, t: (b, t, 0)),
            ],
            out_specs=pl.BlockSpec(
                (1, 1), lambda b, t: (0, 0), memory_space=pltpu.SMEM
            ),
            scratch_shapes=[pltpu.VMEM((1, row_tile, D), jnp.float32)],
        ),
        compiler_params=pltpu.CompilerParams(
            dimension_semantics=("arbitrary", "arbitrary"),
        ),
    )(d_ux_x, d_uy_y)
    return out[0, 0]


def _reference(d_ux_x, d_uy_y, n_internal):
    res = (d_ux_x + d_uy_y)[:, :n_internal, :]
    return jnp.mean(res.astype(jnp.float32) ** 2)


if __name__ == "__main__":
    key = jax.random.PRNGKey(0)

    # Test 1: small shapes matching the module's forward: (B, N, D), n_internal < N.
    k1, k2 = jax.random.split(key)
    B, N, D = 2, 16, 128
    n_internal = 8
    d_ux_x = jax.random.normal(k1, (B, N, D), dtype=jnp.float32)
    d_uy_y = jax.random.normal(k2, (B, N, D), dtype=jnp.float32)

    loss = jax.block_until_ready(continuity_loss(d_ux_x, d_uy_y, n_internal))
    ref = _reference(d_ux_x, d_uy_y, n_internal)
    assert jnp.allclose(loss, ref, rtol=2e-5, atol=1e-6), (loss, ref)

    # Test 2: exercises multi-tile grid + ragged last tile masking.
    k3, k4 = jax.random.split(k2)
    B2, N2, D2 = 2, 2500, 128
    n_internal2 = 2300
    a2 = jax.random.normal(k3, (B2, N2, D2), dtype=jnp.float32)
    b2 = jax.random.normal(k4, (B2, N2, D2), dtype=jnp.float32)

    loss2 = jax.block_until_ready(continuity_loss(a2, b2, n_internal2))
    ref2 = _reference(a2, b2, n_internal2)
    assert jnp.allclose(loss2, ref2, rtol=2e-5, atol=1e-6), (loss2, ref2)

    print("KERNEL_OK")
</pallas_src>

<mosaic_0001>
module attributes {stable_mosaic.version = 11 : i64} {
  func.func @_continuity_loss_kernel(%arg0: i32, %arg1: i32, %arg2: memref<1x16x128xf32, #tpu.memory_space<vmem>>, %arg3: memref<1x16x128xf32, #tpu.memory_space<vmem>>, %arg4: memref<1x1xf32, #tpu.memory_space<smem>>, %arg5: memref<1x16x128xf32, #tpu.memory_space<vmem>>) attributes {dimension_semantics = [#tpu.dimension_semantics<arbitrary>, #tpu.dimension_semantics<arbitrary>], iteration_bounds = array<i64: 2, 1>, scalar_prefetch = 0 : i64, scratch_operands = 1 : i64, tpu.core_type = #tpu.core_type<tc>, window_params = [{transform_indices = @transform_0, window_bounds = array<i64: 1, 16, 128>}, {transform_indices = @transform_1, window_bounds = array<i64: 1, 16, 128>}, {transform_indices = @transform_2, window_bounds = array<i64: 1, 1>}]} {
    %c0_i32 = arith.constant 0 : i32
    %0 = arith.cmpi eq, %arg0, %c0_i32 : i32
    %c0_i32_0 = arith.constant 0 : i32
    %1 = arith.cmpi eq, %arg1, %c0_i32_0 : i32
    %2 = arith.andi %0, %1 : i1
    %3 = arith.extui %2 : i1 to i32
    %c0_i32_1 = arith.constant 0 : i32
    %4 = arith.cmpi ne, %3, %c0_i32_1 : i32
    scf.if %4 {
      %cst_15 = arith.constant 0.000000e+00 : f32
      %25 = vector.broadcast %cst_15 : f32 to vector<1x16x128xf32>
      %c0_16 = arith.constant 0 : index
      %c0_17 = arith.constant 0 : index
      %c0_18 = arith.constant 0 : index
      %26 = vector.load %arg5[%c0_16, %c0_17, %c0_18] : memref<1x16x128xf32, #tpu.memory_space<vmem>>, vector<1x16x128xf32>
      tpu.vector_store %arg5[%c0_16, %c0_17, %c0_18], %25 {strides = array<i32>} : memref<1x16x128xf32, #tpu.memory_space<vmem>>, vector<1x16x128xf32>,
    } else {
    }
    %c0 = arith.constant 0 : index
    %c0_2 = arith.constant 0 : index
    %c0_3 = arith.constant 0 : index
    %5 = vector.load %arg2[%c0, %c0_2, %c0_3] : memref<1x16x128xf32, #tpu.memory_space<vmem>>, vector<1x16x128xf32>
    %c0_4 = arith.constant 0 : index
    %c0_5 = arith.constant 0 : index
    %c0_6 = arith.constant 0 : index
    %6 = vector.load %arg3[%c0_4, %c0_5, %c0_6] : memref<1x16x128xf32, #tpu.memory_space<vmem>>, vector<1x16x128xf32>
    %7 = arith.addf %5, %6 : vector<1x16x128xf32>
    %c16_i32 = arith.constant 16 : i32
    %8 = arith.muli %arg1, %c16_i32 : i32
    %9 = tpu.iota {dimensions = array<i32: 1>} : vector<1x16x128xi32>
    %10 = vector.broadcast %8 : i32 to vector<1x16x128xi32>
    %11 = arith.addi %10, %9 : vector<1x16x128xi32>
    %c8_i32 = arith.constant 8 : i32
    %12 = vector.broadcast %c8_i32 : i32 to vector<1x16x128xi32>
    %13 = arith.cmpi slt, %11, %12 : vector<1x16x128xi32>
    %cst = arith.constant 0.000000e+00 : f32
    %14 = vector.broadcast %cst : f32 to vector<1x16x128xf32>
    %15 = arith.select %13, %7, %14 : vector<1x16x128xi1>, vector<1x16x128xf32>
    %c0_7 = arith.constant 0 : index
    %c0_8 = arith.constant 0 : index
    %c0_9 = arith.constant 0 : index
    %16 = vector.load %arg5[%c0_7, %c0_8, %c0_9] : memref<1x16x128xf32, #tpu.memory_space<vmem>>, vector<1x16x128xf32>
    %17 = arith.mulf %15, %15 : vector<1x16x128xf32>
    %18 = arith.addf %16, %17 : vector<1x16x128xf32>
    %c0_10 = arith.constant 0 : index
    %c0_11 = arith.constant 0 : index
    %c0_12 = arith.constant 0 : index
    %19 = vector.load %arg5[%c0_10, %c0_11, %c0_12] : memref<1x16x128xf32, #tpu.memory_space<vmem>>, vector<1x16x128xf32>
    tpu.vector_store %arg5[%c0_10, %c0_11, %c0_12], %18 {strides = array<i32>} : memref<1x16x128xf32, #tpu.memory_space<vmem>>, vector<1x16x128xf32>,
    %c1_i32 = arith.constant 1 : i32
    %20 = arith.cmpi eq, %arg0, %c1_i32 : i32
    %c0_i32_13 = arith.constant 0 : i32
    %21 = arith.cmpi eq, %arg1, %c0_i32_13 : i32
    %22 = arith.andi %20, %21 : i1
    %23 = arith.extui %22 : i1 to i32
    %c0_i32_14 = arith.constant 0 : i32
    %24 = arith.cmpi ne, %23, %c0_i32_14 : i32
    scf.if %24 {
      %c0_15 = arith.constant 0 : index
      %c0_16 = arith.constant 0 : index
      %c0_17 = arith.constant 0 : index
      %25 = vector.load %arg5[%c0_15, %c0_16, %c0_17] : memref<1x16x128xf32, #tpu.memory_space<vmem>>, vector<1x16x128xf32>
      %26 = vector.shape_cast %25 : vector<1x16x128xf32> to vector<1x1x16x128xf32>
      %cst_18 = arith.constant dense<0.000000e+00> : vector<1xf32>
      %27 = vector.multi_reduction <add>, %26, %cst_18 [1, 2, 3] : vector<1x1x16x128xf32> to vector<1xf32>
      %28 = vector.shape_cast %27 : vector<1xf32> to vector<1x1x1x1xf32>
      %29 = vector.extract %28[0, 0, 0, 0] : f32 from vector<1x1x1x1xf32>
      %cst_19 = arith.constant 4.8828125E-4 : f32
      %30 = arith.mulf %29, %cst_19 : f32
      %c0_20 = arith.constant 0 : index
      %c0_21 = arith.constant 0 : index
      %31 = memref.load %arg4[%c0_20, %c0_21] : memref<1x1xf32, #tpu.memory_space<smem>>
      memref.store %30, %arg4[%c0_20, %c0_21] : memref<1x1xf32, #tpu.memory_space<smem>>
    } else {
    }
    return
  }
  func.func @transform_0(%arg0: i32, %arg1: i32) -> (i32, i32, i32) {
    %c0_i32 = arith.constant 0 : i32
    %c0_i32_0 = arith.constant 0 : i32
    return %arg0, %arg1, %c0_i32 : i32, i32, i32
  }
  func.func @transform_1(%arg0: i32, %arg1: i32) -> (i32, i32, i32) {
    %c0_i32 = arith.constant 0 : i32
    %c0_i32_0 = arith.constant 0 : i32
    return %arg0, %arg1, %c0_i32 : i32, i32, i32
  }
  func.func @transform_2(%arg0: i32, %arg1: i32) -> (i32, i32) {
    %c0_i32 = arith.constant 0 : i32
    %c0_i32_0 = arith.constant 0 : i32
    %c0_i32_1 = arith.constant 0 : i32
    return %c0_i32, %c0_i32_0 : i32, i32
  }
}

</mosaic_0001>

<llo_original>
// kernel: tpu_custom_call.1
$region0: #{tpu_custom_call.1}
  #allocation0 [shape = 'u32[]', space=smem, size = 0x4, offset = 0x4, fixed_abs, tag = 'smem constant byte address 0x4 - core index']
  #allocation1 [shape = 'u32[72,128]{1,0:T(1,128)}', space=vmem, size = 0x9000, scoped, tag = 'internal scratch']
  #allocation2 [shape = 'f32[1,16,128]{2,1,0:T(8,128)}', space=vmem, size = 0x2000, scoped, tag = 'scratch operand']
  %s0 = inlined_call_operand.hbm [shape: f32[2,16,128], index: 0, kind: input, shape index: {}]
  %s1 = inlined_call_operand.hbm [shape: f32[2,16,128], index: 1, kind: input, shape index: {}]
  %s2 = inlined_call_operand.hbm [shape: f32[1,1], index: 2, kind: output, shape index: {}]
  %s3 = sld [smem:[#allocation0]]
  $region57: #{tpu_custom_call.1} parent=0
    _
  %s5 = ssub.s32 1, %s3
  %s6 = scalar_select 0, %s5, %s3
  $region1: #{tpu_custom_call.1} parent=0
    #allocation3 [shape = 'u8[16384]{0}', space=vmem, size = 0x4000, scoped, tag = 'input window, operand 0']
    #allocation4 [shape = 's32[2]{0}', space=sflag, size = 0x8, scoped, tag = 'scoped memory for tpu_custom_call.1']
    #allocation5 [shape = 's32[2]{0}', space=sflag, size = 0x8, scoped, tag = 'scoped memory for tpu_custom_call.1']
    #allocation6 [shape = 'u8[16384]{0}', space=vmem, size = 0x4000, scoped, tag = 'input window, operand 1']
    #allocation7 [shape = 's32[2]{0}', space=sflag, size = 0x8, scoped, tag = 'scoped memory for tpu_custom_call.1']
    #allocation8 [shape = 'u8[512]{0}', space=smem, size = 0x200, scoped, tag = 'output window, operand 0, single buffered']
    %7 = vsyncpa [#allocation4], 0
    %s8 = scalar_lea.sflag [#allocation4], 1
    %9 = vsyncpa %s8, 0
    %10 = vsyncpa [#allocation7], 0
    %s11 = scalar_lea.sflag [#allocation7], 1
    %12 = vsyncpa %s11, 0
    %13 = vsyncpa [#allocation5], 0
    loop: start=0, step=1, limit=4
    $region2: #{tpu_custom_call.1} parent=1 // loop_pre_header
      _
    $region3: #{tpu_custom_call.1} parent=1 // loop_header
      %s15 = sphi 0, %s19
      %p16 = scmp.ge.s32.totalorder %s15, 4
      %s22 = sphi 0, %s34
      %s23 = sphi 0, %s30
      %s24 = sphi 0, %s22
      %s25 = sphi 0, %s23
      %s26 = sphi 0, %s24
      %s27 = sphi 0, %s25
      %s39 = sphi 0, %s41
      %s42 = sphi 0, %s39
      %s43 = sphi 0, %s42
      %s59 = sphi 0, %s43
      %s67 = sphi 0, %s69
      %s70 = sphi 0, %s67
      %s71 = sphi 0, %s70
      %s87 = sphi 0, %s71
      %s91 = sphi 0, %s91
      %s93 = sphi 0, %s91
      %s94 = sphi 0, %s93
      %s108 = sphi 0, %s94
    $region4: #{tpu_custom_call.1} parent=1 // loop_header_branch
      %18 = sbr.rel (%p16) target = $region8
    $region5: #{tpu_custom_call.1} parent=1 // loop_body
      %s20 = ssub.s32 %s15, 1
      %s21 = ssub.s32 %s15, 2
      %s28 = sadd.s32 1, %s23
      %p29 = scmp.ge.s32.totalorder %s28, 1
      %s30 = scalar_select %p29, 0, %s28
      %s31 = sadd.s32 1, %s22
      %s32 = scalar_select %p29, %s31, %s22
      %p33 = scmp.ge.s32.totalorder %s32, 2
      %s34 = scalar_select %p33, 0, %s32
      %s35 = ssub.s32 %s22, %s34
      %s36 = ssub.s32 %s23, %s30
      %s37 = sor.u32 %s35, %s36
      %p38 = scmp.eq.s32.totalorder %s37, 0
      %s40 = sadd.s32 %s39, 1
      %s41 = scalar_select %p38, %s39, %s40
      %p44 = pneg %p38
      %p45 = scmp.eq.s32.totalorder %s15, 1
      %p46 = por %p44, %p45
      %p47 = scmp.ne.s32.totalorder %s39, %s42
      %p48 = scmp.eq.s32.totalorder %s15, 0
      %p49 = por %p47, %p48
      %p50 = scmp.ne.s32.totalorder %s39, %s42
      %p51 = scmp.eq.s32.totalorder %s20, 1
      %p52 = por %p50, %p51
      %p53 = scmp.ne.s32.totalorder %s42, %s43
      %p54 = scmp.eq.s32.totalorder %s20, 0
      %p55 = por %p53, %p54
      %p56 = scmp.ne.s32.totalorder %s42, %s43
      %p57 = scmp.eq.s32.totalorder %s21, 1
      %p58 = por %p56, %p57
      %p60 = scmp.ne.s32.totalorder %s43, %s59
      %p61 = scmp.eq.s32.totalorder %s21, 0
      %p62 = por %p60, %p61
      %s63 = ssub.s32 %s22, %s34
      %s64 = ssub.s32 %s23, %s30
      %s65 = sor.u32 %s63, %s64
      %p66 = scmp.eq.s32.totalorder %s65, 0
      %s68 = sadd.s32 %s67, 1
      %s69 = scalar_select %p66, %s67, %s68
      %p72 = pneg %p66
      %p73 = scmp.eq.s32.totalorder %s15, 1
      %p74 = por %p72, %p73
      %p75 = scmp.ne.s32.totalorder %s67, %s70
      %p76 = scmp.eq.s32.totalorder %s15, 0
      %p77 = por %p75, %p76
      %p78 = scmp.ne.s32.totalorder %s67, %s70
      %p79 = scmp.eq.s32.totalorder %s20, 1
      %p80 = por %p78, %p79
      %p81 = scmp.ne.s32.totalorder %s70, %s71
      %p82 = scmp.eq.s32.totalorder %s20, 0
      %p83 = por %p81, %p82
      %p84 = scmp.ne.s32.totalorder %s70, %s71
      %p85 = scmp.eq.s32.totalorder %s21, 1
      %p86 = por %p84, %p85
      %p88 = scmp.ne.s32.totalorder %s71, %s87
      %p89 = scmp.eq.s32.totalorder %s21, 0
      %p90 = por %p88, %p89
      %s92 = sadd.s32 %s91, 1
      %p95 = scmp.eq.s32.totalorder %s15, 1
      %p96 = scmp.ne.s32.totalorder %s91, %s93
      %p97 = scmp.eq.s32.totalorder %s15, 0
      %p98 = por %p96, %p97
      %p99 = scmp.ne.s32.totalorder %s91, %s93
      %p100 = scmp.eq.s32.totalorder %s20, 1
      %p101 = por %p99, %p100
      %p102 = scmp.ne.s32.totalorder %s93, %s94
      %p103 = scmp.eq.s32.totalorder %s20, 0
      %p104 = por %p102, %p103
      %p105 = scmp.ne.s32.totalorder %s93, %s94
      %p106 = scmp.eq.s32.totalorder %s21, 1
      %p107 = por %p105, %p106
      %p109 = scmp.ne.s32.totalorder %s94, %s108
      %p110 = scmp.eq.s32.totalorder %s21, 0
      %p111 = por %p109, %p110
      %p112 = scmp.le.s32.totalorder 1, %s15
      %p113 = scmp.lt.s32.totalorder %s15, 3
      %p114 = pnand %p112, %p113
      %p115 = pneg %p114
      // Predicated region
      $region9: #{tpu_custom_call.1} parent=5 // pred_check
        _
      $region10: #{tpu_custom_call.1} parent=5 // pred_check_branch
        %117 = sbr.rel (%p114) target = $region12
      $region11: #{tpu_custom_call.1} parent=5 // pred_region
        %s118 = ssub.s32 %s15, 1
      $region12: #{tpu_custom_call.1} parent=5 // pred_fallthru
        _
      %p119 = scmp.lt.s32.totalorder %s15, 2
      // Predicated region
      $region13: #{tpu_custom_call.1} parent=5 // pred_check
        %p120 = pneg %p119
      $region14: #{tpu_custom_call.1} parent=5 // pred_check_branch
        %122 = sbr.rel (%p120) target = $region16
      $region15: #{tpu_custom_call.1} parent=5 // pred_region
        // Predicated region
        $region17: #{tpu_custom_call.1} parent=15 // pred_check
          %p123 = pneg %p49
        $region18: #{tpu_custom_call.1} parent=15 // pred_check_branch
          %125 = sbr.rel (%p123) target = $region20
        $region19: #{tpu_custom_call.1} parent=15 // pred_region
          %s126 = sand.u32 %s39, 1
          %s127 = scalar_lea.sflag [#allocation4], %s126
          %s128 = sand.u32 %s39, 1
          %s129 = smul.addr %s128, 16
          %s130 = scalar_lea.vmem [#allocation3], %s129
          %s131 = smul.u32 2, %s23
          %133 = vsyncadd %s127, 0
          %s134 = smul.addr %s22, 2
          %s135 = sadd.s32 %s131, %s134
          %s136 = smul.addr %s135, 8
          %s137 = scalar_lea.hbm %s0, %s136
          %s138 = sshll.u32 %s137, 4
          %s139 = int_to_ptr.hbm [resolvable:$true] %s138
          %s140 = sshll.u32 %s130, 4
          %s141 = int_to_ptr.vmem [resolvable:$true] %s140
          %146 = dma.hbm_to_vmem [thread:$0]  %s139, 256, %s141, %s127, 128, 128, 8
        $region20: #{tpu_custom_call.1} parent=15 // pred_fallthru
          _
        // Predicated region
        $region21: #{tpu_custom_call.1} parent=15 // pred_check
          %p147 = pneg %p77
        $region22: #{tpu_custom_call.1} parent=15 // pred_check_branch
          %149 = sbr.rel (%p147) target = $region24
        $region23: #{tpu_custom_call.1} parent=15 // pred_region
          %s150 = sand.u32 %s67, 1
          %s151 = scalar_lea.sflag [#allocation7], %s150
          %s152 = sand.u32 %s67, 1
          %s153 = smul.addr %s152, 16
          %s154 = scalar_lea.vmem [#allocation6], %s153
          %s155 = smul.u32 2, %s23
          %157 = vsyncadd %s151, 0
          %s158 = smul.addr %s22, 2
          %s159 = sadd.s32 %s155, %s158
          %s160 = smul.addr %s159, 8
          %s161 = scalar_lea.hbm %s1, %s160
          %s162 = sshll.u32 %s161, 4
          %s163 = int_to_ptr.hbm [resolvable:$true] %s162
          %s164 = sshll.u32 %s154, 4
          %s165 = int_to_ptr.vmem [resolvable:$true] %s164
          %170 = dma.hbm_to_vmem [thread:$0]  %s163, 256, %s165, %s151, 128, 128, 8
        $region24: #{tpu_custom_call.1} parent=15 // pred_fallthru
          _
      $region16: #{tpu_custom_call.1} parent=5 // pred_fallthru
        _
      %p171 = scmp.le.s32.totalorder 1, %s15
      %p172 = scmp.lt.s32.totalorder %s15, 3
      %p173 = pnand %p171, %p172
      %p174 = pneg %p173
      // Predicated region
      $region25: #{tpu_custom_call.1} parent=5 // pred_check
        _
      $region26: #{tpu_custom_call.1} parent=5 // pred_check_branch
        %176 = sbr.rel (%p173) target = $region28
      $region27: #{tpu_custom_call.1} parent=5 // pred_region
        %s177 = ssub.s32 %s15, 1
        %s178 = sand.u32 %s42, 1
        %s179 = scalar_lea.sflag [#allocation4], %s178
        %s180 = sand.u32 %s42, 1
        %s181 = smul.addr %s180, 16
        %s182 = scalar_lea.vmem [#allocation3], %s181
        // Predicated region
        $region29: #{tpu_custom_call.1} parent=27 // pred_check
          %p183 = pneg %p55
        $region30: #{tpu_custom_call.1} parent=27 // pred_check_branch
          %185 = sbr.rel (%p183) target = $region32
        $region31: #{tpu_custom_call.1} parent=27 // pred_region
          %187 = dma.done %s179, 256
        $region32: #{tpu_custom_call.1} parent=27 // pred_fallthru
          _
        %s188 = sand.u32 %s70, 1
        %s189 = scalar_lea.sflag [#allocation7], %s188
        %s190 = sand.u32 %s70, 1
        %s191 = smul.addr %s190, 16
        %s192 = scalar_lea.vmem [#allocation6], %s191
        // Predicated region
        $region33: #{tpu_custom_call.1} parent=27 // pred_check
          %p193 = pneg %p83
        $region34: #{tpu_custom_call.1} parent=27 // pred_check_branch
          %195 = sbr.rel (%p193) target = $region36
        $region35: #{tpu_custom_call.1} parent=27 // pred_region
          %197 = dma.done %s189, 256
        $region36: #{tpu_custom_call.1} parent=27 // pred_fallthru
          _
        %s198 = sand.u32 %s42, 1
        %s199 = scalar_lea.sflag [#allocation4], %s198
        %s200 = sand.u32 %s42, 1
        %s201 = smul.addr %s200, 16
        %s202 = scalar_lea.vmem [#allocation3], %s201
        %p203 = pneg %p55
        %p204 = pneg %p52
        %s205 = sand.u32 %s70, 1
        %s206 = scalar_lea.sflag [#allocation7], %s205
        %s207 = sand.u32 %s70, 1
        %s208 = smul.addr %s207, 16
        %s209 = scalar_lea.vmem [#allocation6], %s208
        %p210 = pneg %p83
        %p211 = pneg %p80
        %p212 = pneg %p104
        %p213 = pneg %p101
        %s214 = smul.u32 2, %s25
        %s215 = smul.u32 2, %s25
        %p216 = scmp.eq.s32.totalorder %s24, 0
        %p217 = scmp.eq.s32.totalorder %s25, 0
        %p218 = pnand %p216, %p217
        %p219 = pneg %p218
        // Predicated region
        $region37: #{tpu_custom_call.1} parent=27 // pred_check
          _
        $region38: #{tpu_custom_call.1} parent=27 // pred_check_branch
          %221 = sbr.rel (%p218) target = $region40
        $region39: #{tpu_custom_call.1} parent=27 // pred_region
          %222 = vst [vmem:[#allocation2] sm:$0xff] 0.0
          %223 = vst [vmem:[#allocation2 + $0x8] sm:$0xff] 0.0
        $region40: #{tpu_custom_call.1} parent=27 // pred_fallthru
          _
        %v224 = vld [vmem:[%s182] sm:$0xff]
        %v225 = vld [vmem:[%s182 + $0x8] sm:$0xff]
        %v226 = vld [vmem:[%s192] sm:$0xff]
        %v227 = vld [vmem:[%s192 + $0x8] sm:$0xff]
        %v228 = vadd.f32 %v224, %v226
        %v229 = vadd.f32 %v225, %v227
        %s230 = smul.u32 %s25, 16
        %v231 = vlaneseq
        %v232 = vshrl.u32 %v231, 7
        %v233 = vadd.s32 %v232, 8
        %v234 = vstv %s230
        %v235 = vadd.s32 %v234, %v232
        %v236 = vadd.s32 %v234, %v233
        %vm237 = vcmp.lt.s32.totalorder %v235, 8
        %vm238 = vcmp.lt.s32.totalorder %v236, 8
        %v239 = vsel %vm237, %v228, 0.0
        %v240 = vsel %vm238, %v229, 0.0
        %v241 = vld [vmem:[#allocation2] sm:$0xff]
        %v242 = vld [vmem:[#allocation2 + $0x8] sm:$0xff]
        %v243 = vmul.f32 %v239, %v239
        %v244 = vmul.f32 %v240, %v240
        %v245 = vadd.f32 %v241, %v243
        %v246 = vadd.f32 %v242, %v244
        %247 = vst [vmem:[#allocation2] sm:$0xff] %v245
        %248 = vst [vmem:[#allocation2 + $0x8] sm:$0xff] %v246
        %p249 = scmp.eq.s32.totalorder %s24, 1
        %p250 = pnand %p249, %p217
        %p251 = pneg %p250
        // Predicated region
        $region41: #{tpu_custom_call.1} parent=27 // pred_check
          _
        $region42: #{tpu_custom_call.1} parent=27 // pred_check_branch
          %253 = sbr.rel (%p250) target = $region44
        $region43: #{tpu_custom_call.1} parent=27 // pred_region
          %v254 = vld [vmem:[#allocation2] sm:$0xff]
          %v255 = vld [vmem:[#allocation2 + $0x8] sm:$0xff]
          %v256 = vadd.f32 %v254, %v255
          %257 = vadd.xlane.f32.xlu0 %v256
          %v258 = vpop.xlane.xlu0 %257
          %v259 = vrot.slane %v258, 4
          %v260 = vadd.f32 %v258, %v259
          %v261 = vrot.slane %v260, 2
          %v262 = vadd.f32 %v260, %v261
          %v263 = vrot.slane %v262, 1
          %v264 = vadd.f32 %v262, %v263
          %s265 = vtos %v264
          %s266 = smul.f32 %s265, 0.00048828125
          %s267 = scalar_lea.smem [#allocation8], 0
          %268 = sst [smem:[%s267]] %s266
        $region44: #{tpu_custom_call.1} parent=27 // pred_fallthru
          _
        // Predicated region
        $region45: #{tpu_custom_call.1} parent=27 // pred_check
          %p269 = pneg %p101
        $region46: #{tpu_custom_call.1} parent=27 // pred_check_branch
          %271 = sbr.rel (%p269) target = $region48
        $region47: #{tpu_custom_call.1} parent=27 // pred_region
          %273 = vsyncadd [#allocation5], 0
          %s275 = sshll.u32 %s2, 4
          %s276 = int_to_ptr.hbm [resolvable:$true] %s275
          %278 = dma.smem_to_hbm [#allocation8], 16, %s276, [#allocation5]
        $region48: #{tpu_custom_call.1} parent=27 // pred_fallthru
          _
        // Predicated region
        $region49: #{tpu_custom_call.1} parent=27 // pred_check
          %p279 = pneg %p101
        $region50: #{tpu_custom_call.1} parent=27 // pred_check_branch
          %281 = sbr.rel (%p279) target = $region52
        $region51: #{tpu_custom_call.1} parent=27 // pred_region
          %283 = dma.done [#allocation5], 16
        $region52: #{tpu_custom_call.1} parent=27 // pred_fallthru
          _
        %284 = sfence
      $region28: #{tpu_custom_call.1} parent=5 // pred_fallthru
        _
      %p285 = scmp.le.s32.totalorder 2, %s15
      // Predicated region
      $region53: #{tpu_custom_call.1} parent=5 // pred_check
        %p286 = pneg %p285
      $region54: #{tpu_custom_call.1} parent=5 // pred_check_branch
        %288 = sbr.rel (%p286) target = $region56
      $region55: #{tpu_custom_call.1} parent=5 // pred_region
        %s289 = ssub.s32 %s15, 2
      $region56: #{tpu_custom_call.1} parent=5 // pred_fallthru
        _
    $region6: #{tpu_custom_call.1} parent=1 // loop_footer
      %s19 = sadd.s32 1, %s15
    $region7: #{tpu_custom_call.1} parent=1 // loop_footer_branch
      %14 = sbr.rel target = $region3
    $region8: #{tpu_custom_call.1} parent=1 // loop_exit
      _
    %290 = vsyncpa [#allocation4], 1
    %s291 = scalar_lea.sflag [#allocation4], 1
    %292 = vsyncpa %s291, 1
    %293 = vsyncpa [#allocation7], 1
    %s294 = scalar_lea.sflag [#allocation7], 1
    %295 = vsyncpa %s294, 1
    %296 = vsyncpa [#allocation5], 1
    %s297 = scalar_lea.sflag [#allocation5], 1
    %298 = vsyncpa %s297, 1

</llo_original>
